<compile_context>
chip_gen: v7x
topology: tpu7x:2x2x1
jax: 0.10.0
libtpu: 0.0.40
codegen_flags: <defaults>
</compile_context>

<pallas_src>
import functools
import math

import jax
import jax.numpy as jnp
from jax.experimental import pallas as pl
from jax.experimental.pallas import tpu as pltpu


def _round_up(n, m):
    return ((n + m - 1) // m) * m


def _default_vmem_limit_bytes():
    # ~96 MiB on v5e/v6e (128 MiB physical), ~48 MiB on v7x (64 MiB physical).
    try:
        cap = int(pltpu.get_tpu_info().vmem_capacity_bytes)
    except Exception:
        cap = 64 * 1024 * 1024
    return max(32 * 1024 * 1024, min((cap * 3) // 4, 100 * 1024 * 1024))


VMEM_LIMIT_BYTES = _default_vmem_limit_bytes()


# ---------------------------------------------------------------------------
# Kernel 1: fused QKV projection  (x @ [Wq|Wk|Wv] + [bq|bk|bv]) -> 3 outputs
# ---------------------------------------------------------------------------
def qkv_fused_kernel(x_ref, w_ref, b_ref, q_ref, k_ref, v_ref, *, hidden, compute_dtype):
    x = x_ref[...].astype(compute_dtype)                    # [TM, K] bf16 -> MXU
    y = jnp.dot(x, w_ref[...], preferred_element_type=jnp.float32)  # [TM, 3H] f32 acc
    y = y + b_ref[...]                                      # f32 bias
    q_ref[...] = y[:, :hidden].astype(q_ref.dtype)
    k_ref[...] = y[:, hidden:2 * hidden].astype(k_ref.dtype)
    v_ref[...] = y[:, 2 * hidden:].astype(v_ref.dtype)


def pallas_qkv_fused(x, wqkv, bqkv, *, tile_m=256, out_dtype=jnp.bfloat16):
    """x: [M, K]; wqkv: [K, 3H] (bf16, Wq pre-scaled); bqkv: [1, 3H] f32."""
    M, K = x.shape
    N3 = wqkv.shape[1]
    H = N3 // 3

    tm = min(tile_m, _round_up(M, 16))
    m_pad = _round_up(M, tm)
    if m_pad != M:
        x = jnp.pad(x, ((0, m_pad - M), (0, 0)))

    qp, kp, vp = pl.pallas_call(
        functools.partial(qkv_fused_kernel, hidden=H, compute_dtype=wqkv.dtype),
        out_shape=tuple(jax.ShapeDtypeStruct((m_pad, H), out_dtype) for _ in range(3)),
        grid_spec=pltpu.PrefetchScalarGridSpec(
            num_scalar_prefetch=0,
            grid=(m_pad // tm,),
            in_specs=[
                pl.BlockSpec((tm, K), lambda i: (i, 0)),   # activation row tile
                pl.BlockSpec((K, N3), lambda i: (0, 0)),   # constant weight (DMA'd once)
                pl.BlockSpec((1, N3), lambda i: (0, 0)),   # constant bias
            ],
            out_specs=tuple(pl.BlockSpec((tm, H), lambda i: (i, 0)) for _ in range(3)),
        ),
        compiler_params=pltpu.CompilerParams(
            dimension_semantics=("parallel",),
            vmem_limit_bytes=VMEM_LIMIT_BYTES,
        ),
    )(x, wqkv, bqkv)
    if m_pad != M:
        qp, kp, vp = qp[:M], kp[:M], vp[:M]
    return qp, kp, vp


# ---------------------------------------------------------------------------
# Kernel 2: row-tiled linear  y = x @ W + b   (W pre-cast, [in, out])
# ---------------------------------------------------------------------------
def linear_kernel(x_ref, w_ref, b_ref, o_ref, *, compute_dtype):
    x = x_ref[...].astype(compute_dtype)
    y = jnp.dot(x, w_ref[...], preferred_element_type=jnp.float32)
    o_ref[...] = (y + b_ref[...]).astype(o_ref.dtype)


def pallas_linear(x, w, b_row, *, out_dtype=None, tile_m=256):
    """x: [M, K]; w: [K, N] (already compute dtype); b_row: [1, N] f32."""
    M, K = x.shape
    N = w.shape[1]
    if out_dtype is None:
        out_dtype = x.dtype

    tm = min(tile_m, _round_up(M, 16))
    m_pad = _round_up(M, tm)
    if m_pad != M:
        x = jnp.pad(x, ((0, m_pad - M), (0, 0)))

    out = pl.pallas_call(
        functools.partial(linear_kernel, compute_dtype=w.dtype),
        out_shape=jax.ShapeDtypeStruct((m_pad, N), out_dtype),
        grid_spec=pltpu.PrefetchScalarGridSpec(
            num_scalar_prefetch=0,
            grid=(m_pad // tm,),
            in_specs=[
                pl.BlockSpec((tm, K), lambda i: (i, 0)),
                pl.BlockSpec((K, N), lambda i: (0, 0)),
                pl.BlockSpec((1, N), lambda i: (0, 0)),
            ],
            out_specs=pl.BlockSpec((tm, N), lambda i: (i, 0)),
        ),
        compiler_params=pltpu.CompilerParams(
            dimension_semantics=("parallel",),
            vmem_limit_bytes=VMEM_LIMIT_BYTES,
        ),
    )(x, w, b_row)
    return out[:M] if m_pad != M else out


# ---------------------------------------------------------------------------
# Kernel 3: attention on the merged [B, S, hidden] layout (heads split in VMEM)
# ---------------------------------------------------------------------------
def mha_attention_kernel(q_ref, k_ref, v_ref, m_ref, o_ref, *, heads, d_head, exp_dtype):
    q = q_ref[0]                                   # [TQ, H] bf16 (scale folded into Wq)
    k = k_ref[0]                                   # [S,  H] bf16
    v = v_ref[0]                                   # [S,  H] bf16
    mq = m_ref[0]                                  # [TQ, 1] f32 (1 = keep, 0 = mask row)

    outs = []
    for h in range(heads):                         # static unroll over heads
        sl = slice(h * d_head, (h + 1) * d_head)
        qh, kh, vh = q[:, sl], k[:, sl], v[:, sl]

        # scores = q_h @ k_h^T (already scaled), f32 accumulation on the MXU
        s = jax.lax.dot_general(qh, kh, (((1,), (1,)), ((), ())),
                                preferred_element_type=jnp.float32)    # [TQ, S]

        # PyTorch masked_fill semantics: whole query row set to -1e9 when mask==0
        # (additive bias would NOT reproduce the uniform-softmax behavior).
        s = jnp.where(mq == 0.0, -1000000000.0, s)

        s_max = jnp.max(s, axis=-1, keepdims=True)
        p = jnp.exp((s - s_max).astype(exp_dtype))                     # EUP
        denom = jnp.sum(p.astype(jnp.float32), axis=-1, keepdims=True)

        # TODO(synk): dropout(prob_attn) is identity here (eval mode).

        ctx = jnp.dot(p.astype(q.dtype), vh, preferred_element_type=jnp.float32)  # [TQ, Dh]
        ctx = ctx * pl.reciprocal(denom, approx=True)   # normalize AFTER P@V (cheaper)
        outs.append(ctx)

    # single lane-dense full-width store into the merged [B, S, hidden] layout
    o_ref[0] = jnp.concatenate(outs, axis=-1).astype(o_ref.dtype)


def pallas_attention(qp, kp, vp, mask, heads, d_head, *, tile_q=256,
                     exp_dtype=jnp.float32):
    """qp/kp/vp: [B, S, hidden] (bf16); mask: None or [B, S] (nonzero = keep)."""
    B, S, H = qp.shape

    tq = min(tile_q, _round_up(S, 16))
    sq_pad = _round_up(S, tq)
    if sq_pad != S:
        qp = jnp.pad(qp, ((0, 0), (0, sq_pad - S), (0, 0)))

    if mask is None:
        mask3 = jnp.ones((B, sq_pad, 1), jnp.float32)
    else:
        mask3 = mask.astype(jnp.float32).reshape(B, S, 1)
        if sq_pad != S:
            mask3 = jnp.pad(mask3, ((0, 0), (0, sq_pad - S), (0, 0)), constant_values=1.0)

    out = pl.pallas_call(
        functools.partial(mha_attention_kernel, heads=heads, d_head=d_head,
                          exp_dtype=exp_dtype),
        out_shape=jax.ShapeDtypeStruct((B, sq_pad, H), qp.dtype),
        grid_spec=pltpu.PrefetchScalarGridSpec(
            num_scalar_prefetch=0,
            grid=(B, sq_pad // tq),                 # q-tile axis innermost: K/V stay resident
            in_specs=[
                pl.BlockSpec((1, tq, H), lambda b, i: (b, i, 0)),   # q tile (merged layout)
                pl.BlockSpec((1, S, H), lambda b, i: (b, 0, 0)),    # full K for this batch
                pl.BlockSpec((1, S, H), lambda b, i: (b, 0, 0)),    # full V for this batch
                pl.BlockSpec((1, tq, 1), lambda b, i: (b, i, 0)),   # query-row mask
            ],
            out_specs=pl.BlockSpec((1, tq, H), lambda b, i: (b, i, 0)),
        ),
        compiler_params=pltpu.CompilerParams(
            dimension_semantics=("parallel", "parallel"),
            vmem_limit_bytes=VMEM_LIMIT_BYTES,
        ),
    )(qp, kp, vp, mask3)
    return out[:, :S] if sq_pad != S else out


# ---------------------------------------------------------------------------
# Parameter preparation (done ONCE): bf16 weights, folded scale, fused QKV weight
# ---------------------------------------------------------------------------
def prepare_mha_params(params, heads, compute_dtype=jnp.bfloat16):
    """params: (wq,bq,wk,bk,wv,bv,wo,bo), weights [in, out] f32."""
    wq, bq, wk, bk, wv, bv, wo, bo = params
    hidden = wq.shape[0]
    assert hidden % heads == 0
    d_head = hidden // heads
    scale = 1.0 / math.sqrt(d_head)

    wq_s, bq_s = wq * scale, bq * scale            # fold 1/sqrt(d_head) into Q projection
    return dict(
        heads=heads, d_head=d_head,
        wqkv=jnp.concatenate([wq_s, wk, wv], axis=1).astype(compute_dtype),
        bqkv=jnp.concatenate([bq_s, bk, bv]).reshape(1, 3 * hidden).astype(jnp.float32),
        wq=wq_s.astype(compute_dtype), bq=bq_s.reshape(1, hidden).astype(jnp.float32),
        wk=wk.astype(compute_dtype), bk=bk.reshape(1, hidden).astype(jnp.float32),
        wv=wv.astype(compute_dtype), bv=bv.reshape(1, hidden).astype(jnp.float32),
        wo=wo.astype(compute_dtype), bo=bo.reshape(1, hidden).astype(jnp.float32),
    )


# ---------------------------------------------------------------------------
# Full module forward
# ---------------------------------------------------------------------------
def multi_head_attention(q, k, v, prep, mask=None, *, tile_m=256, tile_q=256,
                         exp_dtype=jnp.float32):
    """q,k,v: [B, S, hidden] f32; prep: prepare_mha_params(...); mask: None or [B, S]."""
    B, S, H = q.shape
    heads, d_head = prep["heads"], prep["d_head"]
    cdt = prep["wqkv"].dtype

    if (q is k) and (k is v):
        # self-attention: fused QKV — activation read once, one launch
        qp, kp, vp = pallas_qkv_fused(q.reshape(B * S, H), prep["wqkv"], prep["bqkv"],
                                      tile_m=tile_m, out_dtype=cdt)
    else:
        qp = pallas_linear(q.reshape(B * S, H), prep["wq"], prep["bq"], out_dtype=cdt, tile_m=tile_m)
        kp = pallas_linear(k.reshape(B * S, H), prep["wk"], prep["bk"], out_dtype=cdt, tile_m=tile_m)
        vp = pallas_linear(v.reshape(B * S, H), prep["wv"], prep["bv"], out_dtype=cdt, tile_m=tile_m)

    # free reshapes — no head-split transpose, no HBM round trip
    qp, kp, vp = (t.reshape(B, S, H) for t in (qp, kp, vp))

    ctx = pallas_attention(qp, kp, vp, mask, heads, d_head,
                           tile_q=tile_q, exp_dtype=exp_dtype)          # [B, S, H] bf16

    out = pallas_linear(ctx.reshape(B * S, H), prep["wo"], prep["bo"],
                        out_dtype=jnp.float32, tile_m=tile_m)
    return out.reshape(B, S, H)


# ---------------------------------------------------------------------------
# Pure-JAX reference (f32) mirroring the PyTorch forward
# ---------------------------------------------------------------------------
def reference_mha(q, k, v, params, heads, mask=None):
    wq, bq, wk, bk, wv, bv, wo, bo = params
    B, S, Hd = q.shape
    Dh = Hd // heads

    def proj(x, w, b):
        return (x.reshape(B * S, Hd) @ w + b).reshape(B, S, heads, Dh).transpose(0, 2, 1, 3)

    qp, kp, vp = proj(q, wq, bq), proj(k, wk, bk), proj(v, wv, bv)
    corr = jnp.einsum("bhqd,bhkd->bhqk", qp, kp) / math.sqrt(Dh)
    if mask is not None:
        corr = jnp.where(mask[:, None, :, None] == 0, -1000000000.0, corr)
    p = jax.nn.softmax(corr, axis=-1)
    hidden = jnp.einsum("bhqk,bhkd->bhqd", p, vp)
    hidden = hidden.transpose(0, 2, 1, 3).reshape(B * S, Hd)
    return (hidden @ wo + bo).reshape(B, S, Hd)


# ---------------------------------------------------------------------------
# Parameter init helpers (mimic the PyTorch module)
# ---------------------------------------------------------------------------
def xavier_normal(key, out_features, in_features, dtype=jnp.float32):
    std = math.sqrt(2.0 / (in_features + out_features))
    return std * jax.random.normal(key, (out_features, in_features), dtype=dtype)


def default_linear_weight(key, out_features, in_features, dtype=jnp.float32):
    bound = 1.0 / math.sqrt(in_features)
    return jax.random.uniform(key, (out_features, in_features),
                              minval=-bound, maxval=bound, dtype=dtype)


def default_linear_bias(key, out_features, in_features, dtype=jnp.float32):
    bound = 1.0 / math.sqrt(in_features)
    return jax.random.uniform(key, (out_features,),
                              minval=-bound, maxval=bound, dtype=dtype)


if __name__ == "__main__":
    key = jax.random.PRNGKey(0)
    keys = jax.random.split(key, 12)

    batch, seq, hidden, heads = 2, 8, 32, 4

    # nn.Linear weights are [out, in]; pre-transpose to [in, out] for the kernels.
    wq = default_linear_weight(keys[0], hidden, hidden).T
    wk = default_linear_weight(keys[1], hidden, hidden).T
    wv = default_linear_weight(keys[2], hidden, hidden).T
    wo = xavier_normal(keys[3], hidden, hidden).T            # w_layer: xavier_normal_
    bq = default_linear_bias(keys[4], hidden, hidden)
    bk = default_linear_bias(keys[5], hidden, hidden)
    bv = default_linear_bias(keys[6], hidden, hidden)
    bo = default_linear_bias(keys[7], hidden, hidden)
    params = (wq, bq, wk, bk, wv, bv, wo, bo)
    prep = prepare_mha_params(params, heads)                 # one-time bf16 cast / fuse

    q = jax.random.normal(keys[8], (batch, seq, hidden), dtype=jnp.float32)
    k = jax.random.normal(keys[9], (batch, seq, hidden), dtype=jnp.float32)
    v = jax.random.normal(keys[10], (batch, seq, hidden), dtype=jnp.float32)
    mask = (jax.random.uniform(keys[11], (batch, seq)) > 0.3).astype(jnp.float32)

    # --- self-attention (fused QKV path), no mask ---
    x = q
    out_self = multi_head_attention(x, x, x, prep, mask=None)
    jax.block_until_ready(out_self)
    ref_self = reference_mha(x, x, x, params, heads, mask=None)
    assert jnp.allclose(out_self, ref_self, atol=5e-2, rtol=5e-2), "mismatch (self-attn)"

    # --- distinct q/k/v with query-row mask (separate-projection path) ---
    out_m = multi_head_attention(q, k, v, prep, mask=mask)
    jax.block_until_ready(out_m)
    ref_m = reference_mha(q, k, v, params, heads, mask=mask)
    assert jnp.allclose(out_m, ref_m, atol=5e-2, rtol=5e-2), "mismatch (masked)"

    print("KERNEL_OK")
</pallas_src>

<mosaic_0001>
module attributes {stable_mosaic.version = 11 : i64} {
  func.func @qkv_fused_kernel(%arg0: i32, %arg1: memref<16x32xf32, #tpu.memory_space<vmem>>, %arg2: memref<32x96xbf16, #tpu.memory_space<vmem>>, %arg3: memref<1x96xf32, #tpu.memory_space<vmem>>, %arg4: memref<16x32xbf16, #tpu.memory_space<vmem>>, %arg5: memref<16x32xbf16, #tpu.memory_space<vmem>>, %arg6: memref<16x32xbf16, #tpu.memory_space<vmem>>) attributes {dimension_semantics = [#tpu.dimension_semantics<parallel>], iteration_bounds = array<i64: 1>, scalar_prefetch = 0 : i64, scratch_operands = 0 : i64, tpu.core_type = #tpu.core_type<tc>, window_params = [{transform_indices = @transform_0, window_bounds = array<i64: 16, 32>}, {pipeline_mode = #tpu.pipeline_mode<synchronous>, transform_indices = @transform_1, window_bounds = array<i64: 32, 96>}, {pipeline_mode = #tpu.pipeline_mode<synchronous>, transform_indices = @transform_2, window_bounds = array<i64: 1, 96>}, {transform_indices = @transform_3, window_bounds = array<i64: 16, 32>}, {transform_indices = @transform_4, window_bounds = array<i64: 16, 32>}, {transform_indices = @transform_5, window_bounds = array<i64: 16, 32>}]} {
    %c0 = arith.constant 0 : index
    %c0_0 = arith.constant 0 : index
    %0 = vector.load %arg1[%c0, %c0_0] : memref<16x32xf32, #tpu.memory_space<vmem>>, vector<16x32xf32>
    %1 = arith.truncf %0 : vector<16x32xf32> to vector<16x32xbf16>
    %c0_1 = arith.constant 0 : index
    %c0_2 = arith.constant 0 : index
    %2 = vector.load %arg2[%c0_1, %c0_2] : memref<32x96xbf16, #tpu.memory_space<vmem>>, vector<32x96xbf16>
    %cst = arith.constant dense<0.000000e+00> : vector<16x96xf32>
    %3 = tpu.matmul %1, %2, %cst {dimension_numbers = #tpu.dot_dimension_numbers<[1], [0], [0], [1], [0, 0, 1, 1], [], []>} : vector<16x32xbf16>, vector<32x96xbf16>, vector<16x96xf32> -> vector<16x96xf32>
    %c0_3 = arith.constant 0 : index
    %c0_4 = arith.constant 0 : index
    %4 = vector.load %arg3[%c0_3, %c0_4] : memref<1x96xf32, #tpu.memory_space<vmem>>, vector<1x96xf32>
    %5 = vector.broadcast %4 : vector<1x96xf32> to vector<16x96xf32>
    %6 = arith.addf %3, %5 : vector<16x96xf32>
    %7 = vector.extract_strided_slice %6 {offsets = [0, 0], sizes = [16, 32], strides = [1, 1]} : vector<16x96xf32> to vector<16x32xf32>
    %8 = arith.truncf %7 : vector<16x32xf32> to vector<16x32xbf16>
    %c0_5 = arith.constant 0 : index
    %c0_6 = arith.constant 0 : index
    %9 = vector.load %arg4[%c0_5, %c0_6] : memref<16x32xbf16, #tpu.memory_space<vmem>>, vector<16x32xbf16>
    tpu.vector_store %arg4[%c0_5, %c0_6], %8 {strides = array<i32>} : memref<16x32xbf16, #tpu.memory_space<vmem>>, vector<16x32xbf16>,
    %10 = vector.extract_strided_slice %6 {offsets = [0, 32], sizes = [16, 32], strides = [1, 1]} : vector<16x96xf32> to vector<16x32xf32>
    %11 = arith.truncf %10 : vector<16x32xf32> to vector<16x32xbf16>
    %c0_7 = arith.constant 0 : index
    %c0_8 = arith.constant 0 : index
    %12 = vector.load %arg5[%c0_7, %c0_8] : memref<16x32xbf16, #tpu.memory_space<vmem>>, vector<16x32xbf16>
    tpu.vector_store %arg5[%c0_7, %c0_8], %11 {strides = array<i32>} : memref<16x32xbf16, #tpu.memory_space<vmem>>, vector<16x32xbf16>,
    %13 = vector.extract_strided_slice %6 {offsets = [0, 64], sizes = [16, 32], strides = [1, 1]} : vector<16x96xf32> to vector<16x32xf32>
    %14 = arith.truncf %13 : vector<16x32xf32> to vector<16x32xbf16>
    %c0_9 = arith.constant 0 : index
    %c0_10 = arith.constant 0 : index
    %15 = vector.load %arg6[%c0_9, %c0_10] : memref<16x32xbf16, #tpu.memory_space<vmem>>, vector<16x32xbf16>
    tpu.vector_store %arg6[%c0_9, %c0_10], %14 {strides = array<i32>} : memref<16x32xbf16, #tpu.memory_space<vmem>>, vector<16x32xbf16>,
    return
  }
  func.func @transform_0(%arg0: i32) -> (i32, i32) {
    %c0_i32 = arith.constant 0 : i32
    %c0_i32_0 = arith.constant 0 : i32
    return %arg0, %c0_i32 : i32, i32
  }
  func.func @transform_1(%arg0: i32) -> (i32, i32) {
    %c0_i32 = arith.constant 0 : i32
    %c0_i32_0 = arith.constant 0 : i32
    %c0_i32_1 = arith.constant 0 : i32
    return %c0_i32, %c0_i32_0 : i32, i32
  }
  func.func @transform_2(%arg0: i32) -> (i32, i32) {
    %c0_i32 = arith.constant 0 : i32
    %c0_i32_0 = arith.constant 0 : i32
    %c0_i32_1 = arith.constant 0 : i32
    return %c0_i32, %c0_i32_0 : i32, i32
  }
  func.func @transform_3(%arg0: i32) -> (i32, i32) {
    %c0_i32 = arith.constant 0 : i32
    %c0_i32_0 = arith.constant 0 : i32
    return %arg0, %c0_i32 : i32, i32
  }
  func.func @transform_4(%arg0: i32) -> (i32, i32) {
    %c0_i32 = arith.constant 0 : i32
    %c0_i32_0 = arith.constant 0 : i32
    return %arg0, %c0_i32 : i32, i32
  }
  func.func @transform_5(%arg0: i32) -> (i32, i32) {
    %c0_i32 = arith.constant 0 : i32
    %c0_i32_0 = arith.constant 0 : i32
    return %arg0, %c0_i32 : i32, i32
  }
}

</mosaic_0001>

<llo_original>
// kernel: tpu_custom_call.1
$region0: #{tpu_custom_call.1}
  #allocation0 [shape = 'u32[]', space=smem, size = 0x4, offset = 0x4, fixed_abs, tag = 'smem constant byte address 0x4 - core index']
  #allocation1 [shape = 'u32[144,128]{1,0:T(1,128)}', space=vmem, size = 0x12000, scoped, tag = 'internal scratch']
  %s0 = inlined_call_operand.hbm [shape: f32[16,32], index: 0, kind: input, shape index: {}]
  %s1 = inlined_call_operand.hbm [shape: bf16[32,96], index: 1, kind: input, shape index: {}]
  %s2 = inlined_call_operand.vmem [shape: f32[1,96], index: 2, kind: input, shape index: {}]
  %s3 = inlined_call_operand.hbm [shape: bf16[16,32], index: 3, kind: output, shape index: {0}]
  %s4 = inlined_call_operand.hbm [shape: bf16[16,32], index: 4, kind: output, shape index: {1}]
  %s5 = inlined_call_operand.hbm [shape: bf16[16,32], index: 5, kind: output, shape index: {2}]
  %6 = xla_tuple %s3, %s4, %s5
  %s7 = sld [smem:[#allocation0]]
  $region46: #{tpu_custom_call.1} parent=0
    _
  %s9 = ssub.s32 1, %s7
  %s10 = scalar_select 0, %s9, %s7
  $region1: #{tpu_custom_call.1} parent=0
    #allocation2 [shape = 'u8[8192]{0}', space=vmem, size = 0x2000, scoped, tag = 'input window, operand 0, single buffered']
    #allocation3 [shape = 's32[1]{0}', space=sflag, size = 0x4, scoped, tag = 'scoped memory for tpu_custom_call.1']
    #allocation4 [shape = 's32[1]{0}', space=sflag, size = 0x4, scoped, tag = 'scoped memory for tpu_custom_call.1']
    #allocation5 [shape = 'u8[8192]{0}', space=vmem, size = 0x2000, scoped, tag = 'input window, operand 1, single buffered']
    #allocation6 [shape = 's32[1]{0}', space=sflag, size = 0x4, scoped, tag = 'scoped memory for tpu_custom_call.1']
    #allocation7 [shape = 'u8[4096]{0}', space=vmem, size = 0x1000, scoped, tag = 'output window, operand 0, single buffered']
    #allocation8 [shape = 'u8[4096]{0}', space=vmem, size = 0x1000, scoped, tag = 'output window, operand 1, single buffered']
    #allocation9 [shape = 's32[1]{0}', space=sflag, size = 0x4, scoped, tag = 'scoped memory for tpu_custom_call.1']
    #allocation10 [shape = 'u8[4096]{0}', space=vmem, size = 0x1000, scoped, tag = 'output window, operand 2, single buffered']
    %11 = vsyncpa [#allocation3], 0
    %12 = vsyncpa [#allocation6], 0
    %13 = vsyncpa [#allocation4], 0
    %14 = vsyncpa [#allocation9], 0
    // Predicated region
    $region2: #{tpu_custom_call.1} parent=1 // pred_check
      _
    $region3: #{tpu_custom_call.1} parent=1 // pred_check_branch
      %16 = sbr.rel (0) target = $region5
    $region4: #{tpu_custom_call.1} parent=1 // pred_region
      %s18 = ssub.s32 256, 256
      %19 = vsyncadd [#allocation3], %s18
      %s20 = sshll.u32 [#allocation2], 4
      %s21 = int_to_ptr.vmem [resolvable:$true] %s20
      %26 = dma.hbm_to_vmem [thread:$0]  %s0, 256, %s21, [#allocation3], 128, 128, 8
    $region5: #{tpu_custom_call.1} parent=1 // pred_fallthru
      _
    // Predicated region
    $region6: #{tpu_custom_call.1} parent=1 // pred_check
      _
    $region7: #{tpu_custom_call.1} parent=1 // pred_check_branch
      %28 = sbr.rel (0) target = $region9
    $region8: #{tpu_custom_call.1} parent=1 // pred_region
      %s30 = ssub.s32 256, 256
      %31 = vsyncadd [#allocation6], %s30
      %s32 = sshll.u32 [#allocation5], 4
      %s33 = int_to_ptr.vmem [resolvable:$true] %s32
      %38 = dma.hbm_to_vmem [thread:$0]  %s1, 256, %s33, [#allocation6], 64, 64, 4
    $region9: #{tpu_custom_call.1} parent=1 // pred_fallthru
      _
    // Predicated region
    $region10: #{tpu_custom_call.1} parent=1 // pred_check
      _
    $region11: #{tpu_custom_call.1} parent=1 // pred_check_branch
      %40 = sbr.rel (0) target = $region13
    $region12: #{tpu_custom_call.1} parent=1 // pred_region
      _
    $region13: #{tpu_custom_call.1} parent=1 // pred_fallthru
      _
    // Predicated region
    $region14: #{tpu_custom_call.1} parent=1 // pred_check
      _
    $region15: #{tpu_custom_call.1} parent=1 // pred_check_branch
      %42 = sbr.rel (0) target = $region17
    $region16: #{tpu_custom_call.1} parent=1 // pred_region
      %43 = dma.done [#allocation3], 256
    $region17: #{tpu_custom_call.1} parent=1 // pred_fallthru
      _
    // Predicated region
    $region18: #{tpu_custom_call.1} parent=1 // pred_check
      _
    $region19: #{tpu_custom_call.1} parent=1 // pred_check_branch
      %45 = sbr.rel (0) target = $region21
    $region20: #{tpu_custom_call.1} parent=1 // pred_region
      %46 = dma.done [#allocation6], 256
    $region21: #{tpu_custom_call.1} parent=1 // pred_fallthru
      _
    %v48 = vld [vmem:[#allocation2] sm:$0xff]
    %v49 = vld [vmem:[#allocation2 + $0x8] sm:$0xff]
    %v50 = vpack.c.bf16 %v49, %v48
    %v51 = vld [vmem:[#allocation5] sm:$0xf]
    %v52 = vld [vmem:[#allocation5 + $0x4] sm:$0xf]
    %v53 = vld [vmem:[#allocation5 + $0x8] sm:$0xf]
    %v54 = vld [vmem:[#allocation5 + $0xc] sm:$0xf]
    %v55 = vld [vmem:[%s2] sm:$0x1]
    %v57 = vlaneseq
    %v58 = vshrl.u32 %v57, 7
    %v59 = vsub.s32 0, %v58
    %v60 = vrot.slane %v55, %v59
    %v66 = vunpack.c.l.b16 %v51
    %v67 = vunpack.c.l.b16 %v52
    %v68 = vunpack.c.l.b16 %v53
    %v69 = vunpack.c.l.b16 %v54
    %v70 = vpack.c.b16 %v67, %v66
    %v71 = vpack.c.b16 %v69, %v68
    %vm74 = vcmask 261120
    %v76 = vsel %vm74, %v50, 0
    %78 = vmatprep.subr.bf16.mxu0 0
    %79 = vmatpush1.bf16.msra.mxu0 %v70
    %80 = vmatprep.subr.bf16.mxu0 0
    %81 = vmatpush1.bf16.msra.mxu0 %v71
    %82 = vmatprep.subr.bf16.mxu0 0
    %83 = vmatpush1.bf16.msra.mxu0 0
    %84 = vmatprep.subr.bf16.mxu0 0
    %85 = vmatpush1.bf16.msra.mxu0 0
    %86 = vmatprep.subr.bf16.mxu0 0
    %87 = vmatpush1.bf16.msra.mxu0 0
    %88 = vmatprep.subr.bf16.mxu0 0
    %89 = vmatpush1.bf16.msra.mxu0 0
    %90 = vmatprep.subr.bf16.mxu0 0
    %91 = vmatpush1.bf16.msra.mxu0 0
    %92 = vmatprep.subr.bf16.mxu0 0
    %93 = vmatpush1.bf16.msra.mxu0 0
    %94 = vmatprep.subr.bf16.mxu0 0
    %95 = vmatpush1.bf16.msra.mxu0 0
    %96 = vmatprep.subr.bf16.mxu0 0
    %97 = vmatpush1.bf16.msra.mxu0 0
    %98 = vmatprep.subr.bf16.mxu0 0
    %99 = vmatpush1.bf16.msra.mxu0 0
    %100 = vmatprep.subr.bf16.mxu0 0
    %101 = vmatpush1.bf16.msra.mxu0 0
    %102 = vmatprep.subr.bf16.mxu0 0
    %103 = vmatpush1.bf16.msra.mxu0 0
    %104 = vmatprep.subr.bf16.mxu0 0
    %105 = vmatpush1.bf16.msra.mxu0 0
    %106 = vmatprep.subr.bf16.mxu0 0
    %107 = vmatpush1.bf16.msra.mxu0 0
    %108 = vmatprep.subr.bf16.mxu0 0
    %109 = vmatpush1.bf16.msra.mxu0 0
    %110 = vmatprep.mubr.bf16.mxu0 0
    %111 = vmatmul.mubr.bf16.gmra.mrb[0].mxu0 %v76
    %v112 = vpop.f32.mrb[0].mxu0
    %v113 = vadd.f32 %v60, %v112
    %v114 = vpop.f32.mrb[0].mxu0
    %v115 = vpop.f32.mrb[0].mxu0
    %v116 = vadd.f32 %v60, %v115
    %v117 = vpop.f32.mrb[0].mxu0
    %118 = vdwg.mxu0
    %v119 = vpack.c.bf16 %v116, %v113
    %v121 = vunpack.c.l.b16 %v119
    %v122 = vunpack.c.h.b16 %v119
    %v123 = vpack.c.b16 %v121, %v121
    %v124 = vpack.c.b16 %v122, %v122
    %vm127 = vcmask 257024
    %128 = vst.msk [vmem:[#allocation7] sm:$0xf] %vm127, %v123
    %129 = vst.msk [vmem:[#allocation7 + $0x4] sm:$0xf] %vm127, %v124
    %130 = vrot.lane.b32.xlu0 %v123, 96
    %v131 = vpop.permute.xlu0 %130
    %132 = vrot.lane.b32.xlu0 %v124, 96
    %v133 = vpop.permute.xlu0 %132
    %136 = vst.msk [vmem:[#allocation8] sm:$0xf] %vm127, %v131
    %137 = vst.msk [vmem:[#allocation8 + $0x4] sm:$0xf] %vm127, %v133
    %138 = vrot.lane.b32.xlu0 %v123, 64
    %v139 = vpop.permute.xlu0 %138
    %140 = vrot.lane.b32.xlu0 %v124, 64
    %v141 = vpop.permute.xlu0 %140
    %144 = vst.msk [vmem:[#allocation10] sm:$0xf] %vm127, %v139
    %145 = vst.msk [vmem:[#allocation10 + $0x4] sm:$0xf] %vm127, %v141
    // Predicated region
    $region22: #{tpu_custom_call.1} parent=1 // pred_check
      _
    $region23: #{tpu_custom_call.1} parent=1 // pred_check_branch
      %147 = sbr.rel (0) target = $region25
    $region24: #{tpu_custom_call.1} parent=1 // pred_region
      %s149 = ssub.s32 128, 128
      %150 = vsyncadd [#allocation4], %s149
      %s151 = sshll.u32 [#allocation7], 4
      %s152 = int_to_ptr.vmem [resolvable:$true] %s151
      %157 = dma.vmem_to_hbm [thread:$0]  %s152, 128, %s3, [#allocation4], 64, 64, 4
    $region25: #{tpu_custom_call.1} parent=1 // pred_fallthru
      _
    // Predicated region
    $region26: #{tpu_custom_call.1} parent=1 // pred_check
      _
    $region27: #{tpu_custom_call.1} parent=1 // pred_check_branch
      %159 = sbr.rel (0) target = $region29
    $region28: #{tpu_custom_call.1} parent=1 // pred_region
      %s161 = ssub.s32 128, 128
      %162 = vsyncadd [#allocation9], %s161
      %s163 = sshll.u32 [#allocation8], 4
      %s164 = int_to_ptr.vmem [resolvable:$true] %s163
      %169 = dma.vmem_to_hbm [thread:$0]  %s164, 128, %s4, [#allocation9], 64, 64, 4
    $region29: #{tpu_custom_call.1} parent=1 // pred_fallthru
      _
    // Predicated region
    $region30: #{tpu_custom_call.1} parent=1 // pred_check
      _
    $region31: #{tpu_custom_call.1} parent=1 // pred_check_branch
      %171 = sbr.rel (0) target = $region33
    $region32: #{tpu_custom_call.1} parent=1 // pred_region
      %s173 = ssub.s32 128, 128
      %174 = vsyncadd [#allocation9], %s173
      %s175 = sshll.u32 [#allocation10], 4
      %s176 = int_to_ptr.vmem [resolvable:$true] %s175
      %181 = dma.vmem_to_hbm [thread:$0]  %s176, 128, %s5, [#allocation9], 64, 64, 4
    $region33: #{tpu_custom_call.1} parent=1 // pred_fallthru
      _
    // Predicated region
    $region34: #{tpu_custom_call.1} parent=1 // pred_check
      _
    $region35: #{tpu_custom_call.1} parent=1 // pred_check_branch
      %183 = sbr.rel (0) target = $region37
    $region36: #{tpu_custom_call.1} parent=1 // pred_region
      %184 = dma.done [#allocation4], 128
    $region37: #{tpu_custom_call.1} parent=1 // pred_fallthru
      _
    // Predicated region
    $region38: #{tpu_custom_call.1} parent=1 // pred_check
      _
    $region39: #{tpu_custom_call.1} parent=1 // pred_check_branch
      %186 = sbr.rel (0) target = $region41
    $region40: #{tpu_custom_call.1} parent=1 // pred_region
      %187 = dma.done [#allocation9], 128
    $region41: #{tpu_custom_call.1} parent=1 // pred_fallthru
      _
    // Predicated region
    $region42: #{tpu_custom_call.1} parent=1 // pred_check
      _
    $region43: #{tpu_custom_call.1} parent=1 // pred_check_branch
      %189 = sbr.rel (0) target = $region45
    $region44: #{tpu_custom_call.1} parent=1 // pred_region
      %190 = dma.done [#allocation9], 128
    $region45: #{tpu_custom_call.1} parent=1 // pred_fallthru
      _
    %191 = vsyncpa [#allocation3], 1
    %192 = vsyncpa [#allocation6], 1
    %193 = vsyncpa [#allocation4], 1
    %194 = vsyncpa [#allocation9], 1

</llo_original>
